<compile_context>
chip_gen: v6e
topology: v6e:2x2x1
jax: 0.10.0
libtpu: 0.0.40
codegen_flags: <defaults>
</compile_context>

<pallas_src>
import functools

import jax
import jax.numpy as jnp
from jax import lax
from jax.experimental import pallas as pl
from jax.experimental.pallas import tpu as pltpu


def _round_up(x, m):
    return ((x + m - 1) // m) * m


# --------------------------------------------------------------------------
# Kernel: one (batch, W-tile) per grid step.
#   x_ref  : (1, H, Wt, Cin)        current time tile (no halo)
#   w_ref  : (mult, K*K, Cin)       per-channel taps, block channel order
#   b_ref  : (mult, Cin)            optional bias
#   o_ref  : (1, Ho, Wt, Cout)      padded-output column tile
#   xp_ref : (H+2P, L+Wt, Cin)      persistent padded scratch (halo carry)
# --------------------------------------------------------------------------
def _dwconv2d_kernel(*refs, K, H, Wt, Ho, sh, mult, Cin, Tc, L, has_bias):
    if has_bias:
        x_ref, w_ref, b_ref, o_ref, xp_ref = refs
    else:
        x_ref, w_ref, o_ref, xp_ref = refs
        b_ref = None

    P = K // 2
    KK = K * K
    Hp = H + 2 * P
    wt_idx = pl.program_id(1)

    # ---- stage the current tile (+ halos) into the padded VMEM scratch ----
    if P > 0:
        @pl.when(wt_idx == 0)
        def _init_halo():
            # Zero only what is read: left column halo (conv zero padding for
            # the first tile) and the top/bottom row padding of the interior.
            xp_ref[:, L - 2 * P:L, :] = jnp.zeros((Hp, 2 * P, Cin), jnp.float32)
            xp_ref[0:P, L:, :] = jnp.zeros((P, Wt, Cin), jnp.float32)
            xp_ref[P + H:, L:, :] = jnp.zeros((P, Wt, Cin), jnp.float32)

        @pl.when(wt_idx > 0)
        def _carry_halo():
            # Left halo := last 2P interior columns of the previous tile
            # (their pad rows are already zero, so copying all rows is fine).
            xp_ref[:, L - 2 * P:L, :] = xp_ref[:, L + Wt - 2 * P:L + Wt, :]

    # Sublane-aligned interior copy (column offset L is a multiple of 8).
    xp_ref[P:P + H, L:L + Wt, :] = x_ref[0].astype(jnp.float32)

    # ---- hoist taps / bias into registers once per grid step --------------
    w = w_ref[...].astype(jnp.float32)                       # (mult, K*K, Cin)
    taps = [[w[j, t].reshape(1, 1, Cin) for t in range(KK)] for j in range(mult)]
    if has_bias:
        b = b_ref[...].astype(jnp.float32)                    # (mult, Cin)
        bvecs = [b[j].reshape(1, 1, Cin) for j in range(mult)]

    nc = -(-Wt // Tc)                                          # static

    # ---- one output row per iteration keeps the accumulator in vregs ------
    # (acc is (1, Tc, C): <= 16 vregs for Tc=128, C=128; taps/bias are closure
    #  constants so no per-iteration sublane extracts.)
    def row_body(r, carry):
        for ci in range(nc):
            c0 = min(ci * Tc, Wt - Tc)                        # static, mult of 8
            accs = [jnp.zeros((1, Tc, Cin), jnp.float32) for _ in range(mult)]
            for dh in range(K):
                row = r * sh + dh                              # strided rows read directly
                for dw in range(K):
                    cs = L - 2 * P + c0 + dw                   # static column start
                    win = xp_ref[pl.ds(row, 1), pl.ds(cs, Tc), :]
                    # NOTE: if bundle dumps show vld saturated, derive the dw
                    # shifts of one aligned load with pltpu.roll instead.
                    for j in range(mult):
                        accs[j] = accs[j] + win * taps[j][dh * K + dw]
            if has_bias:
                accs = [a + bv for a, bv in zip(accs, bvecs)]
            res = accs[0] if mult == 1 else jnp.concatenate(accs, axis=-1)
            # Lane-dense store of the full C_out width.
            o_ref[0, pl.ds(r, 1), pl.ds(c0, Tc), :] = res.astype(o_ref.dtype)
        return carry

    lax.fori_loop(0, Ho, row_body, 0)


# --------------------------------------------------------------------------
# Wrapper: PyTorch NCHW in / NCHW out, groups = in_channels.
# --------------------------------------------------------------------------
def depthwise_conv2d_block(x, weight, bias=None, stride=(1, 1), w_tile=None):
    """Forward pass of DepthwiseConv2dBlock.

    x:      (B, C_in, H, W)   float32   (PyTorch NCHW)
    weight: (C_out, 1, K, K)  float32   (grouped-conv layout, groups=C_in)
    bias:   (C_out,) or None
    stride: (sh, sw)
    w_tile: time-axis tile width (None -> auto-choose to fit default VMEM)
    returns (B, C_out, Ho, Wo) float32
    """
    B, Cin, H, W = x.shape
    Cout, wc, K, K2 = weight.shape
    assert K == K2 and wc == 1, "square depthwise kernel expected"
    assert Cout % Cin == 0, "groups=in_channels needs out_channels % in_channels == 0"
    mult = Cout // Cin
    sh, sw = stride
    P = K // 2
    Ho = (H + 2 * P - K) // sh + 1
    W1 = W + 2 * P - K + 1                 # stride-1 output width (sw applied later)
    L = max(8, _round_up(max(2 * P, 1), 8))  # sublane-aligned left pad region

    # Choose the time tile so double-buffered blocks + scratch fit well inside
    # the *default* scoped VMEM on every generation (no vmem_limit override).
    if w_tile is None:
        budget = 12 * 1024 * 1024
        Wt = 512
        while Wt > 8:
            need = 4 * (2 * (H * Wt * Cin + Ho * Wt * Cout)
                        + (H + 2 * P) * (L + Wt) * Cin)
            if need <= budget:
                break
            Wt //= 2
        Wt = min(Wt, _round_up(W1 + P, 8))
    else:
        Wt = _round_up(w_tile, 8)
    Wt = max(Wt, _round_up(max(2 * P, 8), 8))
    Tc = min(128, Wt)

    n_wt = -(-(W1 + P) // Wt)              # tiles of padded-output columns
    Wp = n_wt * Wt                         # padded input / output width

    # NCHW -> NHWC (channels on the lane dim) and right-pad the time axis.
    # TODO(synk): in production keep activations NHWC across the surrounding
    # block so these two wrapper transposes (full HBM passes) disappear; a
    # bf16 HBM carry would further halve DMA bytes on v6e/v7x.
    xh = jnp.transpose(x, (0, 2, 3, 1)).astype(jnp.float32)
    if Wp > W:
        xh = jnp.pad(xh, ((0, 0), (0, 0), (0, Wp - W), (0, 0)))

    # (C_out,1,K,K) -> (mult, K*K, C_in):  wk[j, t, i] = weight[i*mult + j, 0, t]
    wk = jnp.transpose(weight.reshape(Cin, mult, K * K), (1, 2, 0)).astype(jnp.float32)

    has_bias = bias is not None
    args = [xh, wk]
    in_specs = [
        pl.BlockSpec((1, H, Wt, Cin), lambda b, w: (b, 0, w, 0)),
        pl.BlockSpec((mult, K * K, Cin), lambda b, w: (0, 0, 0)),
    ]
    if has_bias:
        bk = jnp.transpose(jnp.asarray(bias, jnp.float32).reshape(Cin, mult), (1, 0))
        args.append(bk)
        in_specs.append(pl.BlockSpec((mult, Cin), lambda b, w: (0, 0)))

    kern = functools.partial(_dwconv2d_kernel, K=K, H=H, Wt=Wt, Ho=Ho, sh=sh,
                             mult=mult, Cin=Cin, Tc=Tc, L=L, has_bias=has_bias)

    out = pl.pallas_call(
        kern,
        grid=(B, n_wt),
        in_specs=in_specs,
        out_specs=pl.BlockSpec((1, Ho, Wt, Cout), lambda b, w: (b, 0, w, 0)),
        out_shape=jax.ShapeDtypeStruct((B, Ho, Wp, Cout), jnp.float32),
        scratch_shapes=[pltpu.VMEM((H + 2 * P, L + Wt, Cin), jnp.float32)],
        compiler_params=pltpu.CompilerParams(
            dimension_semantics=("parallel", "arbitrary")),
    )(*args)

    out = out[:, :, P:P + W1, :]           # drop the P junk columns / right pad
    if sw > 1:
        # TODO(synk): ECAPA2 never strides the time axis; rare sw>1 is handled
        # by subsampling the stride-1 output (wastes sw x column compute).
        out = out[:, :, ::sw, :]
    if mult > 1:
        # kernel channel order j*Cin + i  ->  PyTorch grouped order i*mult + j
        Bo, Hoo, Woo, _ = out.shape
        out = out.reshape(Bo, Hoo, Woo, mult, Cin)
        out = jnp.transpose(out, (0, 1, 2, 4, 3)).reshape(Bo, Hoo, Woo, Cout)
    return jnp.transpose(out, (0, 3, 1, 2))  # NHWC -> NCHW (module interface)


# --------------------------------------------------------------------------
# Reference (XLA grouped conv) for correctness checking.
# --------------------------------------------------------------------------
def _reference(x, weight, bias, stride):
    Cin = x.shape[1]
    P = weight.shape[2] // 2
    y = lax.conv_general_dilated(
        x.astype(jnp.float32), weight.astype(jnp.float32),
        window_strides=stride, padding=[(P, P), (P, P)],
        dimension_numbers=("NCHW", "OIHW", "NCHW"),
        feature_group_count=Cin, precision=lax.Precision.HIGHEST)
    if bias is not None:
        y = y + bias[None, :, None, None]
    return y


# ==========================================================================
if __name__ == "__main__":
    key = jax.random.PRNGKey(0)
    k1, k2, k3, k4, k5, k6, k7 = jax.random.split(key, 7)

    B, C, H, W, K = 2, 128, 16, 16, 3

    # Case 1: plain depthwise (out=in), stride (1,1), no bias; W tiled in 3
    # tiles of 8 columns to exercise the halo carry.
    x1 = jax.random.normal(k1, (B, C, H, W), dtype=jnp.float32)
    w1 = 0.1 * jax.random.normal(k2, (C, 1, K, K), dtype=jnp.float32)
    y1 = depthwise_conv2d_block(x1, w1, bias=None, stride=(1, 1), w_tile=8)
    r1 = _reference(x1, w1, None, (1, 1))

    # Case 2: channel multiplier 2, frequency stride (2,1), with bias, tiled W.
    Cin2, Cout2 = 64, 128
    x2 = jax.random.normal(k3, (B, Cin2, H, W), dtype=jnp.float32)
    w2 = 0.1 * jax.random.normal(k4, (Cout2, 1, K, K), dtype=jnp.float32)
    b2 = 0.1 * jax.random.normal(k5, (Cout2,), dtype=jnp.float32)
    y2 = depthwise_conv2d_block(x2, w2, bias=b2, stride=(2, 1), w_tile=8)
    r2 = _reference(x2, w2, b2, (2, 1))

    # Case 3: same as case 1 but auto tile width (single-tile path).
    y3 = depthwise_conv2d_block(x1, w1, bias=None, stride=(1, 1))

    # Case 4: 5x5 kernel (2-column halo), bias, tiled W.
    K4 = 5
    w4 = 0.1 * jax.random.normal(k6, (C, 1, K4, K4), dtype=jnp.float32)
    b4 = 0.1 * jax.random.normal(k7, (C,), dtype=jnp.float32)
    y4 = depthwise_conv2d_block(x1, w4, bias=b4, stride=(1, 1), w_tile=8)
    r4 = _reference(x1, w4, b4, (1, 1))

    y1, y2, y3, y4 = jax.block_until_ready((y1, y2, y3, y4))

    assert y1.shape == r1.shape == (B, C, H, W), (y1.shape, r1.shape)
    assert y2.shape == r2.shape == (B, Cout2, H // 2, W), (y2.shape, r2.shape)
    assert y4.shape == r4.shape == (B, C, H, W), (y4.shape, r4.shape)
    for y in (y1, y2, y3, y4):
        assert bool(jnp.all(jnp.isfinite(y)))
    assert float(jnp.max(jnp.abs(y1 - r1))) < 1e-3
    assert float(jnp.max(jnp.abs(y2 - r2))) < 1e-3
    assert float(jnp.max(jnp.abs(y3 - r1))) < 1e-3
    assert float(jnp.max(jnp.abs(y4 - r4))) < 1e-3
    print("KERNEL_OK")
</pallas_src>

<mosaic_0001>
module attributes {stable_mosaic.version = 11 : i64} {
  func.func @_dwconv2d_kernel(%arg0: i32, %arg1: i32, %arg2: memref<1x16x8x128xf32, #tpu.memory_space<vmem>>, %arg3: memref<1x9x128xf32, #tpu.memory_space<vmem>>, %arg4: memref<1x16x8x128xf32, #tpu.memory_space<vmem>>, %arg5: memref<18x16x128xf32, #tpu.memory_space<vmem>>) attributes {dimension_semantics = [#tpu.dimension_semantics<parallel>, #tpu.dimension_semantics<arbitrary>], iteration_bounds = array<i64: 2, 3>, scalar_prefetch = 0 : i64, scratch_operands = 1 : i64, tpu.core_type = #tpu.core_type<tc>, window_params = [{transform_indices = @transform_0, window_bounds = array<i64: 1, 16, 8, 128>}, {pipeline_mode = #tpu.pipeline_mode<synchronous>, transform_indices = @transform_1, window_bounds = array<i64: 1, 9, 128>}, {transform_indices = @transform_2, window_bounds = array<i64: 1, 16, 8, 128>}]} {
    %c0_i32 = arith.constant 0 : i32
    %0 = arith.cmpi eq, %arg1, %c0_i32 : i32
    %1 = arith.extui %0 : i1 to i32
    %c0_i32_0 = arith.constant 0 : i32
    %2 = arith.cmpi ne, %1, %c0_i32_0 : i32
    scf.if %2 {
      %cst = arith.constant 0.000000e+00 : f32
      %38 = vector.broadcast %cst : f32 to vector<18x2x128xf32>
      %c0_12 = arith.constant 0 : index
      %c6 = arith.constant 6 : index
      %c0_13 = arith.constant 0 : index
      %39 = vector.load %arg5[%c0_12, %c6, %c0_13] : memref<18x16x128xf32, #tpu.memory_space<vmem>>, vector<18x2x128xf32>
      tpu.vector_store %arg5[%c0_12, %c6, %c0_13], %38 {strides = array<i32>} : memref<18x16x128xf32, #tpu.memory_space<vmem>>, vector<18x2x128xf32>,
      %cst_14 = arith.constant 0.000000e+00 : f32
      %40 = vector.broadcast %cst_14 : f32 to vector<1x8x128xf32>
      %c0_15 = arith.constant 0 : index
      %c8_16 = arith.constant 8 : index
      %c0_17 = arith.constant 0 : index
      %41 = vector.load %arg5[%c0_15, %c8_16, %c0_17] : memref<18x16x128xf32, #tpu.memory_space<vmem>>, vector<1x8x128xf32>
      tpu.vector_store %arg5[%c0_15, %c8_16, %c0_17], %40 {strides = array<i32>} : memref<18x16x128xf32, #tpu.memory_space<vmem>>, vector<1x8x128xf32>,
      %cst_18 = arith.constant 0.000000e+00 : f32
      %42 = vector.broadcast %cst_18 : f32 to vector<1x8x128xf32>
      %c17 = arith.constant 17 : index
      %c8_19 = arith.constant 8 : index
      %c0_20 = arith.constant 0 : index
      %43 = vector.load %arg5[%c17, %c8_19, %c0_20] : memref<18x16x128xf32, #tpu.memory_space<vmem>>, vector<1x8x128xf32>
      tpu.vector_store %arg5[%c17, %c8_19, %c0_20], %42 {strides = array<i32>} : memref<18x16x128xf32, #tpu.memory_space<vmem>>, vector<1x8x128xf32>,
    } else {
    }
    %c0_i32_1 = arith.constant 0 : i32
    %3 = arith.cmpi sgt, %arg1, %c0_i32_1 : i32
    %4 = arith.extui %3 : i1 to i32
    %c0_i32_2 = arith.constant 0 : i32
    %5 = arith.cmpi ne, %4, %c0_i32_2 : i32
    scf.if %5 {
      %c0_12 = arith.constant 0 : index
      %c14 = arith.constant 14 : index
      %c0_13 = arith.constant 0 : index
      %38 = vector.load %arg5[%c0_12, %c14, %c0_13] : memref<18x16x128xf32, #tpu.memory_space<vmem>>, vector<18x2x128xf32>
      %c0_14 = arith.constant 0 : index
      %c6 = arith.constant 6 : index
      %c0_15 = arith.constant 0 : index
      %39 = vector.load %arg5[%c0_14, %c6, %c0_15] : memref<18x16x128xf32, #tpu.memory_space<vmem>>, vector<18x2x128xf32>
      tpu.vector_store %arg5[%c0_14, %c6, %c0_15], %38 {strides = array<i32>} : memref<18x16x128xf32, #tpu.memory_space<vmem>>, vector<18x2x128xf32>,
    } else {
    }
    %c0 = arith.constant 0 : index
    %c0_3 = arith.constant 0 : index
    %c0_4 = arith.constant 0 : index
    %c0_5 = arith.constant 0 : index
    %6 = vector.load %arg2[%c0, %c0_3, %c0_4, %c0_5] : memref<1x16x8x128xf32, #tpu.memory_space<vmem>>, vector<1x16x8x128xf32>
    %7 = vector.shape_cast %6 : vector<1x16x8x128xf32> to vector<16x8x128xf32>
    %c1 = arith.constant 1 : index
    %c8 = arith.constant 8 : index
    %c0_6 = arith.constant 0 : index
    %8 = vector.load %arg5[%c1, %c8, %c0_6] : memref<18x16x128xf32, #tpu.memory_space<vmem>>, vector<16x8x128xf32>
    tpu.vector_store %arg5[%c1, %c8, %c0_6], %7 {strides = array<i32>} : memref<18x16x128xf32, #tpu.memory_space<vmem>>, vector<16x8x128xf32>,
    %c0_7 = arith.constant 0 : index
    %c0_8 = arith.constant 0 : index
    %c0_9 = arith.constant 0 : index
    %9 = vector.load %arg3[%c0_7, %c0_8, %c0_9] : memref<1x9x128xf32, #tpu.memory_space<vmem>>, vector<1x9x128xf32>
    %10 = vector.extract_strided_slice %9 {offsets = [0, 0, 0], sizes = [1, 1, 128], strides = [1, 1, 1]} : vector<1x9x128xf32> to vector<1x1x128xf32>
    %11 = vector.shape_cast %10 : vector<1x1x128xf32> to vector<128xf32>
    %12 = vector.shape_cast %11 : vector<128xf32> to vector<1x1x128xf32>
    %13 = vector.extract_strided_slice %9 {offsets = [0, 1, 0], sizes = [1, 1, 128], strides = [1, 1, 1]} : vector<1x9x128xf32> to vector<1x1x128xf32>
    %14 = vector.shape_cast %13 : vector<1x1x128xf32> to vector<128xf32>
    %15 = vector.shape_cast %14 : vector<128xf32> to vector<1x1x128xf32>
    %16 = vector.extract_strided_slice %9 {offsets = [0, 2, 0], sizes = [1, 1, 128], strides = [1, 1, 1]} : vector<1x9x128xf32> to vector<1x1x128xf32>
    %17 = vector.shape_cast %16 : vector<1x1x128xf32> to vector<128xf32>
    %18 = vector.shape_cast %17 : vector<128xf32> to vector<1x1x128xf32>
    %19 = vector.extract_strided_slice %9 {offsets = [0, 3, 0], sizes = [1, 1, 128], strides = [1, 1, 1]} : vector<1x9x128xf32> to vector<1x1x128xf32>
    %20 = vector.shape_cast %19 : vector<1x1x128xf32> to vector<128xf32>
    %21 = vector.shape_cast %20 : vector<128xf32> to vector<1x1x128xf32>
    %22 = vector.extract_strided_slice %9 {offsets = [0, 4, 0], sizes = [1, 1, 128], strides = [1, 1, 1]} : vector<1x9x128xf32> to vector<1x1x128xf32>
    %23 = vector.shape_cast %22 : vector<1x1x128xf32> to vector<128xf32>
    %24 = vector.shape_cast %23 : vector<128xf32> to vector<1x1x128xf32>
    %25 = vector.extract_strided_slice %9 {offsets = [0, 5, 0], sizes = [1, 1, 128], strides = [1, 1, 1]} : vector<1x9x128xf32> to vector<1x1x128xf32>
    %26 = vector.shape_cast %25 : vector<1x1x128xf32> to vector<128xf32>
    %27 = vector.shape_cast %26 : vector<128xf32> to vector<1x1x128xf32>
    %28 = vector.extract_strided_slice %9 {offsets = [0, 6, 0], sizes = [1, 1, 128], strides = [1, 1, 1]} : vector<1x9x128xf32> to vector<1x1x128xf32>
    %29 = vector.shape_cast %28 : vector<1x1x128xf32> to vector<128xf32>
    %30 = vector.shape_cast %29 : vector<128xf32> to vector<1x1x128xf32>
    %31 = vector.extract_strided_slice %9 {offsets = [0, 7, 0], sizes = [1, 1, 128], strides = [1, 1, 1]} : vector<1x9x128xf32> to vector<1x1x128xf32>
    %32 = vector.shape_cast %31 : vector<1x1x128xf32> to vector<128xf32>
    %33 = vector.shape_cast %32 : vector<128xf32> to vector<1x1x128xf32>
    %34 = vector.extract_strided_slice %9 {offsets = [0, 8, 0], sizes = [1, 1, 128], strides = [1, 1, 1]} : vector<1x9x128xf32> to vector<1x1x128xf32>
    %35 = vector.shape_cast %34 : vector<1x1x128xf32> to vector<128xf32>
    %36 = vector.shape_cast %35 : vector<128xf32> to vector<1x1x128xf32>
    %c0_i32_10 = arith.constant 0 : i32
    %c16_i32 = arith.constant 16 : i32
    %37 = arith.addi %c0_i32_10, %c16_i32 : i32
    %c1_i32 = arith.constant 1 : i32
    scf.for %arg6 = %c0_i32_10 to %37 step %c1_i32  : i32 {
      %cst = arith.constant 0.000000e+00 : f32
      %38 = vector.broadcast %cst : f32 to vector<1x8x128xf32>
      %c1_i32_12 = arith.constant 1 : i32
      %39 = arith.muli %arg6, %c1_i32_12 : i32
      %c0_i32_13 = arith.constant 0 : i32
      %40 = arith.addi %39, %c0_i32_13 : i32
      %41 = arith.index_cast %40 : i32 to index
      %c6 = arith.constant 6 : index
      %c0_14 = arith.constant 0 : index
      %42 = vector.load %arg5[%41, %c6, %c0_14] : memref<18x16x128xf32, #tpu.memory_space<vmem>>, vector<1x8x128xf32>
      %43 = vector.broadcast %12 : vector<1x1x128xf32> to vector<1x8x128xf32>
      %44 = arith.mulf %42, %43 : vector<1x8x128xf32>
      %45 = arith.addf %38, %44 : vector<1x8x128xf32>
      %46 = arith.index_cast %40 : i32 to index
      %c7 = arith.constant 7 : index
      %c0_15 = arith.constant 0 : index
      %47 = vector.load %arg5[%46, %c7, %c0_15] : memref<18x16x128xf32, #tpu.memory_space<vmem>>, vector<1x8x128xf32>
      %48 = vector.broadcast %15 : vector<1x1x128xf32> to vector<1x8x128xf32>
      %49 = arith.mulf %47, %48 : vector<1x8x128xf32>
      %50 = arith.addf %45, %49 : vector<1x8x128xf32>
      %51 = arith.index_cast %40 : i32 to index
      %c8_16 = arith.constant 8 : index
      %c0_17 = arith.constant 0 : index
      %52 = vector.load %arg5[%51, %c8_16, %c0_17] : memref<18x16x128xf32, #tpu.memory_space<vmem>>, vector<1x8x128xf32>
      %53 = vector.broadcast %18 : vector<1x1x128xf32> to vector<1x8x128xf32>
      %54 = arith.mulf %52, %53 : vector<1x8x128xf32>
      %55 = arith.addf %50, %54 : vector<1x8x128xf32>
      %c1_i32_18 = arith.constant 1 : i32
      %56 = arith.muli %arg6, %c1_i32_18 : i32
      %c1_i32_19 = arith.constant 1 : i32
      %57 = arith.addi %56, %c1_i32_19 : i32
      %58 = arith.index_cast %57 : i32 to index
      %c6_20 = arith.constant 6 : index
      %c0_21 = arith.constant 0 : index
      %59 = vector.load %arg5[%58, %c6_20, %c0_21] : memref<18x16x128xf32, #tpu.memory_space<vmem>>, vector<1x8x128xf32>
      %60 = vector.broadcast %21 : vector<1x1x128xf32> to vector<1x8x128xf32>
      %61 = arith.mulf %59, %60 : vector<1x8x128xf32>
      %62 = arith.addf %55, %61 : vector<1x8x128xf32>
      %63 = arith.index_cast %57 : i32 to index
      %c7_22 = arith.constant 7 : index
      %c0_23 = arith.constant 0 : index
      %64 = vector.load %arg5[%63, %c7_22, %c0_23] : memref<18x16x128xf32, #tpu.memory_space<vmem>>, vector<1x8x128xf32>
      %65 = vector.broadcast %24 : vector<1x1x128xf32> to vector<1x8x128xf32>
      %66 = arith.mulf %64, %65 : vector<1x8x128xf32>
      %67 = arith.addf %62, %66 : vector<1x8x128xf32>
      %68 = arith.index_cast %57 : i32 to index
      %c8_24 = arith.constant 8 : index
      %c0_25 = arith.constant 0 : index
      %69 = vector.load %arg5[%68, %c8_24, %c0_25] : memref<18x16x128xf32, #tpu.memory_space<vmem>>, vector<1x8x128xf32>
      %70 = vector.broadcast %27 : vector<1x1x128xf32> to vector<1x8x128xf32>
      %71 = arith.mulf %69, %70 : vector<1x8x128xf32>
      %72 = arith.addf %67, %71 : vector<1x8x128xf32>
      %c1_i32_26 = arith.constant 1 : i32
      %73 = arith.muli %arg6, %c1_i32_26 : i32
      %c2_i32 = arith.constant 2 : i32
      %74 = arith.addi %73, %c2_i32 : i32
      %75 = arith.index_cast %74 : i32 to index
      %c6_27 = arith.constant 6 : index
      %c0_28 = arith.constant 0 : index
      %76 = vector.load %arg5[%75, %c6_27, %c0_28] : memref<18x16x128xf32, #tpu.memory_space<vmem>>, vector<1x8x128xf32>
      %77 = vector.broadcast %30 : vector<1x1x128xf32> to vector<1x8x128xf32>
      %78 = arith.mulf %76, %77 : vector<1x8x128xf32>
      %79 = arith.addf %72, %78 : vector<1x8x128xf32>
      %80 = arith.index_cast %74 : i32 to index
      %c7_29 = arith.constant 7 : index
      %c0_30 = arith.constant 0 : index
      %81 = vector.load %arg5[%80, %c7_29, %c0_30] : memref<18x16x128xf32, #tpu.memory_space<vmem>>, vector<1x8x128xf32>
      %82 = vector.broadcast %33 : vector<1x1x128xf32> to vector<1x8x128xf32>
      %83 = arith.mulf %81, %82 : vector<1x8x128xf32>
      %84 = arith.addf %79, %83 : vector<1x8x128xf32>
      %85 = arith.index_cast %74 : i32 to index
      %c8_31 = arith.constant 8 : index
      %c0_32 = arith.constant 0 : index
      %86 = vector.load %arg5[%85, %c8_31, %c0_32] : memref<18x16x128xf32, #tpu.memory_space<vmem>>, vector<1x8x128xf32>
      %87 = vector.broadcast %36 : vector<1x1x128xf32> to vector<1x8x128xf32>
      %88 = arith.mulf %86, %87 : vector<1x8x128xf32>
      %89 = arith.addf %84, %88 : vector<1x8x128xf32>
      %c0_33 = arith.constant 0 : index
      %90 = arith.index_cast %arg6 : i32 to index
      %c0_34 = arith.constant 0 : index
      %c0_35 = arith.constant 0 : index
      %91 = vector.load %arg4[%c0_33, %90, %c0_34, %c0_35] : memref<1x16x8x128xf32, #tpu.memory_space<vmem>>, vector<1x1x8x128xf32>
      %92 = vector.shape_cast %91 : vector<1x1x8x128xf32> to vector<1x8x128xf32>
      %93 = vector.shape_cast %89 : vector<1x8x128xf32> to vector<1x1x8x128xf32>
      tpu.vector_store %arg4[%c0_33, %90, %c0_34, %c0_35], %93 {strides = array<i32>} : memref<1x16x8x128xf32, #tpu.memory_space<vmem>>, vector<1x1x8x128xf32>,
    }
    %c16_i32_11 = arith.constant 16 : i32
    return
  }
  func.func @transform_0(%arg0: i32, %arg1: i32) -> (i32, i32, i32, i32) {
    %c0_i32 = arith.constant 0 : i32
    %c0_i32_0 = arith.constant 0 : i32
    %c0_i32_1 = arith.constant 0 : i32
    return %arg0, %c0_i32, %arg1, %c0_i32_0 : i32, i32, i32, i32
  }
  func.func @transform_1(%arg0: i32, %arg1: i32) -> (i32, i32, i32) {
    %c0_i32 = arith.constant 0 : i32
    %c0_i32_0 = arith.constant 0 : i32
    %c0_i32_1 = arith.constant 0 : i32
    %c0_i32_2 = arith.constant 0 : i32
    return %c0_i32, %c0_i32_0, %c0_i32_1 : i32, i32, i32
  }
  func.func @transform_2(%arg0: i32, %arg1: i32) -> (i32, i32, i32, i32) {
    %c0_i32 = arith.constant 0 : i32
    %c0_i32_0 = arith.constant 0 : i32
    %c0_i32_1 = arith.constant 0 : i32
    return %arg0, %c0_i32, %arg1, %c0_i32_0 : i32, i32, i32, i32
  }
}

</mosaic_0001>

<llo_original>
// kernel: tpu_custom_call.1
$region0: #{tpu_custom_call.1}
  #allocation0 [shape = 'u32[]', space=smem, size = 0x4, offset = 0x4, fixed_abs, tag = 'smem constant byte address 0x4 - core index']
  #allocation1 [shape = 'u32[144,128]{1,0:T(1,128)}', space=vmem, size = 0x12000, scoped, tag = 'internal scratch']
  #allocation2 [shape = 'f32[18,16,128]{2,1,0:T(8,128)}', space=vmem, size = 0x24000, scoped, tag = 'scratch operand']
  %s0 = inlined_call_operand.hbm [shape: f32[2,16,24,128], index: 0, kind: input, shape index: {}]
  %s1 = inlined_call_operand.vmem [shape: f32[1,9,128], index: 1, kind: input, shape index: {}]
  %s2 = inlined_call_operand.hbm [shape: f32[2,16,24,128], index: 2, kind: output, shape index: {}]
  %s3 = sld [smem:[#allocation0]]
  $region60: #{tpu_custom_call.1} parent=0
    _
  %s5 = ssub.s32 1, %s3
  %s6 = scalar_select 0, %s5, %s3
  $region1: #{tpu_custom_call.1} parent=0
    #allocation3 [shape = 'u8[131072]{0}', space=vmem, size = 0x20000, scoped, tag = 'input window, operand 0']
    #allocation4 [shape = 's32[2]{0}', space=sflag, size = 0x8, scoped, tag = 'scoped memory for tpu_custom_call.1']
    #allocation5 [shape = 's32[2]{0}', space=sflag, size = 0x8, scoped, tag = 'scoped memory for tpu_custom_call.1']
    #allocation6 [shape = 'u8[131072]{0}', space=vmem, size = 0x20000, scoped, tag = 'output window, operand 0']
    %7 = vsyncpa [#allocation4], 0
    %s8 = scalar_lea.sflag [#allocation4], 1
    %9 = vsyncpa %s8, 0
    %10 = vsyncpa [#allocation5], 0
    %s11 = scalar_lea.sflag [#allocation5], 1
    %12 = vsyncpa %s11, 0
    loop: start=0, step=1, limit=8
    $region2: #{tpu_custom_call.1} parent=1 // loop_pre_header
      _
    $region3: #{tpu_custom_call.1} parent=1 // loop_header
      %s14 = sphi 0, %s18
      %p15 = scmp.ge.s32.totalorder %s14, 8
      %s21 = sphi 0, %s33
      %s22 = sphi 0, %s29
      %s23 = sphi 0, %s21
      %s24 = sphi 0, %s22
      %s25 = sphi 0, %s23
      %s26 = sphi 0, %s24
      %s38 = sphi 0, %s40
      %s41 = sphi 0, %s38
      %s42 = sphi 0, %s41
      %s58 = sphi 0, %s42
      %s62 = sphi 0, %s62
      %s64 = sphi 0, %s62
      %s65 = sphi 0, %s64
      %s79 = sphi 0, %s65
      %s87 = sphi 0, %s89
      %s90 = sphi 0, %s87
      %s91 = sphi 0, %s90
      %s107 = sphi 0, %s91
    $region4: #{tpu_custom_call.1} parent=1 // loop_header_branch
      %17 = sbr.rel (%p15) target = $region8
    $region5: #{tpu_custom_call.1} parent=1 // loop_body
      %s19 = ssub.s32 %s14, 1
      %s20 = ssub.s32 %s14, 2
      %s27 = sadd.s32 1, %s22
      %p28 = scmp.ge.s32.totalorder %s27, 3
      %s29 = scalar_select %p28, 0, %s27
      %s30 = sadd.s32 1, %s21
      %s31 = scalar_select %p28, %s30, %s21
      %p32 = scmp.ge.s32.totalorder %s31, 2
      %s33 = scalar_select %p32, 0, %s31
      %s34 = ssub.s32 %s21, %s33
      %s35 = ssub.s32 %s22, %s29
      %s36 = sor.u32 %s34, %s35
      %p37 = scmp.eq.s32.totalorder %s36, 0
      %s39 = sadd.s32 %s38, 1
      %s40 = scalar_select %p37, %s38, %s39
      %p43 = pneg %p37
      %p44 = scmp.eq.s32.totalorder %s14, 5
      %p45 = por %p43, %p44
      %p46 = scmp.ne.s32.totalorder %s38, %s41
      %p47 = scmp.eq.s32.totalorder %s14, 0
      %p48 = por %p46, %p47
      %p49 = scmp.ne.s32.totalorder %s38, %s41
      %p50 = scmp.eq.s32.totalorder %s19, 5
      %p51 = por %p49, %p50
      %p52 = scmp.ne.s32.totalorder %s41, %s42
      %p53 = scmp.eq.s32.totalorder %s19, 0
      %p54 = por %p52, %p53
      %p55 = scmp.ne.s32.totalorder %s41, %s42
      %p56 = scmp.eq.s32.totalorder %s20, 5
      %p57 = por %p55, %p56
      %p59 = scmp.ne.s32.totalorder %s42, %s58
      %p60 = scmp.eq.s32.totalorder %s20, 0
      %p61 = por %p59, %p60
      %s63 = sadd.s32 %s62, 1
      %p66 = scmp.eq.s32.totalorder %s14, 5
      %p67 = scmp.ne.s32.totalorder %s62, %s64
      %p68 = scmp.eq.s32.totalorder %s14, 0
      %p69 = por %p67, %p68
      %p70 = scmp.ne.s32.totalorder %s62, %s64
      %p71 = scmp.eq.s32.totalorder %s19, 5
      %p72 = por %p70, %p71
      %p73 = scmp.ne.s32.totalorder %s64, %s65
      %p74 = scmp.eq.s32.totalorder %s19, 0
      %p75 = por %p73, %p74
      %p76 = scmp.ne.s32.totalorder %s64, %s65
      %p77 = scmp.eq.s32.totalorder %s20, 5
      %p78 = por %p76, %p77
      %p80 = scmp.ne.s32.totalorder %s65, %s79
      %p81 = scmp.eq.s32.totalorder %s20, 0
      %p82 = por %p80, %p81
      %s83 = ssub.s32 %s21, %s33
      %s84 = ssub.s32 %s22, %s29
      %s85 = sor.u32 %s83, %s84
      %p86 = scmp.eq.s32.totalorder %s85, 0
      %s88 = sadd.s32 %s87, 1
      %s89 = scalar_select %p86, %s87, %s88
      %p92 = pneg %p86
      %p93 = scmp.eq.s32.totalorder %s14, 5
      %p94 = por %p92, %p93
      %p95 = scmp.ne.s32.totalorder %s87, %s90
      %p96 = scmp.eq.s32.totalorder %s14, 0
      %p97 = por %p95, %p96
      %p98 = scmp.ne.s32.totalorder %s87, %s90
      %p99 = scmp.eq.s32.totalorder %s19, 5
      %p100 = por %p98, %p99
      %p101 = scmp.ne.s32.totalorder %s90, %s91
      %p102 = scmp.eq.s32.totalorder %s19, 0
      %p103 = por %p101, %p102
      %p104 = scmp.ne.s32.totalorder %s90, %s91
      %p105 = scmp.eq.s32.totalorder %s20, 5
      %p106 = por %p104, %p105
      %p108 = scmp.ne.s32.totalorder %s91, %s107
      %p109 = scmp.eq.s32.totalorder %s20, 0
      %p110 = por %p108, %p109
      %p111 = scmp.le.s32.totalorder 1, %s14
      %p112 = scmp.lt.s32.totalorder %s14, 7
      %p113 = pnand %p111, %p112
      %p114 = pneg %p113
      // Predicated region
      $region9: #{tpu_custom_call.1} parent=5 // pred_check
        _
      $region10: #{tpu_custom_call.1} parent=5 // pred_check_branch
        %116 = sbr.rel (%p113) target = $region12
      $region11: #{tpu_custom_call.1} parent=5 // pred_region
        %s117 = ssub.s32 %s14, 1
        // Predicated region
        $region13: #{tpu_custom_call.1} parent=11 // pred_check
          %p118 = pneg %p75
        $region14: #{tpu_custom_call.1} parent=11 // pred_check_branch
          %120 = sbr.rel (%p118) target = $region16
        $region15: #{tpu_custom_call.1} parent=11 // pred_region
          _
        $region16: #{tpu_custom_call.1} parent=11 // pred_fallthru
          _
      $region12: #{tpu_custom_call.1} parent=5 // pred_fallthru
        _
      %p121 = scmp.lt.s32.totalorder %s14, 6
      // Predicated region
      $region17: #{tpu_custom_call.1} parent=5 // pred_check
        %p122 = pneg %p121
      $region18: #{tpu_custom_call.1} parent=5 // pred_check_branch
        %124 = sbr.rel (%p122) target = $region20
      $region19: #{tpu_custom_call.1} parent=5 // pred_region
        // Predicated region
        $region21: #{tpu_custom_call.1} parent=19 // pred_check
          %p125 = pneg %p48
        $region22: #{tpu_custom_call.1} parent=19 // pred_check_branch
          %127 = sbr.rel (%p125) target = $region24
        $region23: #{tpu_custom_call.1} parent=19 // pred_region
          %s128 = sand.u32 %s38, 1
          %s129 = scalar_lea.sflag [#allocation4], %s128
          %s130 = sand.u32 %s38, 1
          %s131 = smul.addr %s130, 128
          %s132 = scalar_lea.vmem [#allocation3], %s131
          %s134 = ssub.s32 2048, 2048
          %135 = vsyncadd %s129, %s134
          %s136 = smul.addr %s21, 48
          %s137 = sadd.s32 %s22, %s136
          %s138 = smul.addr %s137, 128
          %s139 = scalar_lea.hbm %s0, %s138
          %s140 = sshll.u32 %s132, 4
          %s141 = int_to_ptr.vmem [resolvable:$true] %s140
          %146 = dma.hbm_to_vmem [thread:$0]  %s139, 2048, %s141, %s129, 384, 128, 8
        $region24: #{tpu_custom_call.1} parent=19 // pred_fallthru
          _
      $region20: #{tpu_custom_call.1} parent=5 // pred_fallthru
        _
      %p147 = scmp.le.s32.totalorder 1, %s14
      %p148 = scmp.lt.s32.totalorder %s14, 7
      %p149 = pnand %p147, %p148
      %p150 = pneg %p149
      // Predicated region
      $region25: #{tpu_custom_call.1} parent=5 // pred_check
        _
      $region26: #{tpu_custom_call.1} parent=5 // pred_check_branch
        %152 = sbr.rel (%p149) target = $region28
      $region27: #{tpu_custom_call.1} parent=5 // pred_region
        %s153 = ssub.s32 %s14, 1
        %s154 = sand.u32 %s41, 1
        %s155 = scalar_lea.sflag [#allocation4], %s154
        %s156 = sand.u32 %s41, 1
        %s157 = smul.addr %s156, 128
        %s158 = scalar_lea.vmem [#allocation3], %s157
        // Predicated region
        $region29: #{tpu_custom_call.1} parent=27 // pred_check
          %p159 = pneg %p54
        $region30: #{tpu_custom_call.1} parent=27 // pred_check_branch
          %161 = sbr.rel (%p159) target = $region32
        $region31: #{tpu_custom_call.1} parent=27 // pred_region
          %162 = dma.done %s155, 2048
        $region32: #{tpu_custom_call.1} parent=27 // pred_fallthru
          _
        %s163 = sand.u32 %s41, 1
        %s164 = scalar_lea.sflag [#allocation4], %s163
        %s165 = sand.u32 %s41, 1
        %s166 = smul.addr %s165, 128
        %s167 = scalar_lea.vmem [#allocation3], %s166
        %p168 = pneg %p54
        %p169 = pneg %p51
        %p170 = pneg %p75
        %p171 = pneg %p72
        %p172 = pneg %p103
        %p173 = pneg %p100
        %s174 = sand.u32 %s90, 1
        %s175 = scalar_lea.sflag [#allocation5], %s174
        %s176 = sand.u32 %s90, 1
        %s177 = smul.addr %s176, 128
        %s178 = scalar_lea.vmem [#allocation6], %s177
        %p179 = scmp.eq.s32.totalorder %s24, 0
        // Predicated region
        $region33: #{tpu_custom_call.1} parent=27 // pred_check
          %p180 = pneg %p179
        $region34: #{tpu_custom_call.1} parent=27 // pred_check_branch
          %182 = sbr.rel (%p180) target = $region36
        $region35: #{tpu_custom_call.1} parent=27 // pred_region
          %183 = vst [vmem:[#allocation2 + $0x6] sm:$0x3] 0.0
          %184 = vst [vmem:[#allocation2 + $0x16] sm:$0x3] 0.0
          %185 = vst [vmem:[#allocation2 + $0x26] sm:$0x3] 0.0
          %186 = vst [vmem:[#allocation2 + $0x36] sm:$0x3] 0.0
          %187 = vst [vmem:[#allocation2 + $0x46] sm:$0x3] 0.0
          %188 = vst [vmem:[#allocation2 + $0x56] sm:$0x3] 0.0
          %189 = vst [vmem:[#allocation2 + $0x66] sm:$0x3] 0.0
          %190 = vst [vmem:[#allocation2 + $0x76] sm:$0x3] 0.0
          %191 = vst [vmem:[#allocation2 + $0x86] sm:$0x3] 0.0
          %192 = vst [vmem:[#allocation2 + $0x96] sm:$0x3] 0.0
          %193 = vst [vmem:[#allocation2 + $0xa6] sm:$0x3] 0.0
          %194 = vst [vmem:[#allocation2 + $0xb6] sm:$0x3] 0.0
          %195 = vst [vmem:[#allocation2 + $0xc6] sm:$0x3] 0.0
          %196 = vst [vmem:[#allocation2 + $0xd6] sm:$0x3] 0.0
          %197 = vst [vmem:[#allocation2 + $0xe6] sm:$0x3] 0.0
          %198 = vst [vmem:[#allocation2 + $0xf6] sm:$0x3] 0.0
          %199 = vst [vmem:[#allocation2 + $0x106] sm:$0x3] 0.0
          %200 = vst [vmem:[#allocation2 + $0x116] sm:$0x3] 0.0
          %201 = vst [vmem:[#allocation2 + $0x8] sm:$0xff] 0.0
          %s202 = scalar_lea.vmem [#allocation2], 272
          %203 = vst [vmem:[%s202 + $0x8] sm:$0xff] 0.0
        $region36: #{tpu_custom_call.1} parent=27 // pred_fallthru
          _
        %p204 = scmp.gt.s32.totalorder %s24, 0
        // Predicated region
        $region37: #{tpu_custom_call.1} parent=27 // pred_check
          %p205 = pneg %p204
        $region38: #{tpu_custom_call.1} parent=27 // pred_check_branch
          %207 = sbr.rel (%p205) target = $region40
        $region39: #{tpu_custom_call.1} parent=27 // pred_region
          %v208 = vld [vmem:[#allocation2 + $0xe] sm:$0x3]
          %v209 = vld [vmem:[#allocation2 + $0x1e] sm:$0x3]
          %v210 = vld [vmem:[#allocation2 + $0x2e] sm:$0x3]
          %v211 = vld [vmem:[#allocation2 + $0x3e] sm:$0x3]
          %v212 = vld [vmem:[#allocation2 + $0x4e] sm:$0x3]
          %v213 = vld [vmem:[#allocation2 + $0x5e] sm:$0x3]
          %v214 = vld [vmem:[#allocation2 + $0x6e] sm:$0x3]
          %v215 = vld [vmem:[#allocation2 + $0x7e] sm:$0x3]
          %v216 = vld [vmem:[#allocation2 + $0x8e] sm:$0x3]
          %v217 = vld [vmem:[#allocation2 + $0x9e] sm:$0x3]
          %v218 = vld [vmem:[#allocation2 + $0xae] sm:$0x3]
          %v219 = vld [vmem:[#allocation2 + $0xbe] sm:$0x3]
          %v220 = vld [vmem:[#allocation2 + $0xce] sm:$0x3]
          %v221 = vld [vmem:[#allocation2 + $0xde] sm:$0x3]
          %v222 = vld [vmem:[#allocation2 + $0xee] sm:$0x3]
          %v223 = vld [vmem:[#allocation2 + $0xfe] sm:$0x3]
          %v224 = vld [vmem:[#allocation2 + $0x10e] sm:$0x3]
          %v225 = vld [vmem:[#allocation2 + $0x11e] sm:$0x3]
          %226 = vst [vmem:[#allocation2 + $0x6] sm:$0x3] %v208
          %227 = vst [vmem:[#allocation2 + $0x16] sm:$0x3] %v209
          %228 = vst [vmem:[#allocation2 + $0x26] sm:$0x3] %v210
          %229 = vst [vmem:[#allocation2 + $0x36] sm:$0x3] %v211
          %230 = vst [vmem:[#allocation2 + $0x46] sm:$0x3] %v212
          %231 = vst [vmem:[#allocation2 + $0x56] sm:$0x3] %v213
          %232 = vst [vmem:[#allocation2 + $0x66] sm:$0x3] %v214
          %233 = vst [vmem:[#allocation2 + $0x76] sm:$0x3] %v215
          %234 = vst [vmem:[#allocation2 + $0x86] sm:$0x3] %v216
          %235 = vst [vmem:[#allocation2 + $0x96] sm:$0x3] %v217
          %236 = vst [vmem:[#allocation2 + $0xa6] sm:$0x3] %v218
          %237 = vst [vmem:[#allocation2 + $0xb6] sm:$0x3] %v219
          %238 = vst [vmem:[#allocation2 + $0xc6] sm:$0x3] %v220
          %239 = vst [vmem:[#allocation2 + $0xd6] sm:$0x3] %v221
          %240 = vst [vmem:[#allocation2 + $0xe6] sm:$0x3] %v222
          %241 = vst [vmem:[#allocation2 + $0xf6] sm:$0x3] %v223
          %242 = vst [vmem:[#allocation2 + $0x106] sm:$0x3] %v224
          %243 = vst [vmem:[#allocation2 + $0x116] sm:$0x3] %v225
        $region40: #{tpu_custom_call.1} parent=27 // pred_fallthru
          _
        %v244 = vld [vmem:[%s158] sm:$0xff]
        %v245 = vld [vmem:[%s158 + $0x8] sm:$0xff]
        %v246 = vld [vmem:[%s158 + $0x10] sm:$0xff]
        %v247 = vld [vmem:[%s158 + $0x18] sm:$0xff]
        %v248 = vld [vmem:[%s158 + $0x20] sm:$0xff]
        %v249 = vld [vmem:[%s158 + $0x28] sm:$0xff]
        %v250 = vld [vmem:[%s158 + $0x30] sm:$0xff]
        %v251 = vld [vmem:[%s158 + $0x38] sm:$0xff]
        %v252 = vld [vmem:[%s158 + $0x40] sm:$0xff]
        %v253 = vld [vmem:[%s158 + $0x48] sm:$0xff]
        %v254 = vld [vmem:[%s158 + $0x50] sm:$0xff]
        %v255 = vld [vmem:[%s158 + $0x58] sm:$0xff]
        %v256 = vld [vmem:[%s158 + $0x60] sm:$0xff]
        %v257 = vld [vmem:[%s158 + $0x68] sm:$0xff]
        %v258 = vld [vmem:[%s158 + $0x70] sm:$0xff]
        %v259 = vld [vmem:[%s158 + $0x78] sm:$0xff]
        %s260 = scalar_lea.vmem [#allocation2], 16
        %261 = vst [vmem:[%s260 + $0x8] sm:$0xff] %v244
        %262 = vst [vmem:[%s260 + $0x18] sm:$0xff] %v245
        %263 = vst [vmem:[%s260 + $0x28] sm:$0xff] %v246
        %264 = vst [vmem:[%s260 + $0x38] sm:$0xff] %v247
        %265 = vst [vmem:[%s260 + $0x48] sm:$0xff] %v248
        %266 = vst [vmem:[%s260 + $0x58] sm:$0xff] %v249
        %267 = vst [vmem:[%s260 + $0x68] sm:$0xff] %v250
        %268 = vst [vmem:[%s260 + $0x78] sm:$0xff] %v251
        %269 = vst [vmem:[%s260 + $0x88] sm:$0xff] %v252
        %270 = vst [vmem:[%s260 + $0x98] sm:$0xff] %v253
        %271 = vst [vmem:[%s260 + $0xa8] sm:$0xff] %v254
        %272 = vst [vmem:[%s260 + $0xb8] sm:$0xff] %v255
        %273 = vst [vmem:[%s260 + $0xc8] sm:$0xff] %v256
        %274 = vst [vmem:[%s260 + $0xd8] sm:$0xff] %v257
        %275 = vst [vmem:[%s260 + $0xe8] sm:$0xff] %v258
        %276 = vst [vmem:[%s260 + $0xf8] sm:$0xff] %v259
        %v277 = vld [vmem:[%s1] sm:$0xff]
        %v278 = vld [vmem:[%s1 + $0x8] sm:$0x1]
        loop: start=0, step=1, limit=16
        $region41: #{tpu_custom_call.1} parent=27 // loop_pre_header
          _
        $region42: #{tpu_custom_call.1} parent=27 // loop_header
          %s280 = sphi 0, %s284
          %p281 = scmp.ge.s32.totalorder %s280, 16
        $region43: #{tpu_custom_call.1} parent=27 // loop_header_branch
          %283 = sbr.rel (%p281) target = $region47
        $region44: #{tpu_custom_call.1} parent=27 // loop_body
          %s285 = smul.u32 %s280, 16
          %s286 = scalar_lea.vmem [#allocation2], %s285
          %v287 = vld [vmem:[%s286 + $0x6] sm:$0xff]
          %v288 = vlaneseq
          %v289 = vshrl.u32 %v288, 7
          %v290 = vsub.s32 0, %v289
          %v291 = vrot.slane %v277, %v290
          %v292 = vmul.f32 %v287, %v291
          %v293 = vadd.f32 %v292, 0.0
          %v294 = vld [vmem:[%s286 + $0x7] sm:$0xff]
          %v295 = vlaneseq
          %v296 = vshrl.u32 %v295, 7
          %v297 = vsub.s32 1, %v296
          %v298 = vrot.slane %v277, %v297
          %v299 = vmul.f32 %v294, %v298
          %v300 = vadd.f32 %v293, %v299
          %v301 = vld [vmem:[%s286 + $0x8] sm:$0xff]
          %v302 = vlaneseq
          %v303 = vshrl.u32 %v302, 7
          %v304 = vsub.s32 2, %v303
          %v305 = vrot.slane %v277, %v304
          %v306 = vmul.f32 %v301, %v305
          %v307 = vadd.f32 %v300, %v306
          %s308 = sadd.s32 %s280, 1
          %s309 = smul.u32 %s308, 16
          %s310 = scalar_lea.vmem [#allocation2], %s309
          %v311 = vld [vmem:[%s310 + $0x6] sm:$0xff]
          %v312 = vlaneseq
          %v313 = vshrl.u32 %v312, 7
          %v314 = vsub.s32 3, %v313
          %v315 = vrot.slane %v277, %v314
          %v316 = vmul.f32 %v311, %v315
          %v317 = vadd.f32 %v307, %v316
          %v318 = vld [vmem:[%s310 + $0x7] sm:$0xff]
          %v319 = vlaneseq
          %v320 = vshrl.u32 %v319, 7
          %v321 = vsub.s32 4, %v320
          %v322 = vrot.slane %v277, %v321
          %v323 = vmul.f32 %v318, %v322
          %v324 = vadd.f32 %v317, %v323
          %v325 = vld [vmem:[%s310 + $0x8] sm:$0xff]
          %v326 = vlaneseq
          %v327 = vshrl.u32 %v326, 7
          %v328 = vsub.s32 5, %v327
          %v329 = vrot.slane %v277, %v328
          %v330 = vmul.f32 %v325, %v329
          %v331 = vadd.f32 %v324, %v330
          %s332 = sadd.s32 %s280, 2
          %s333 = smul.u32 %s332, 16
          %s334 = scalar_lea.vmem [#allocation2], %s333
          %v335 = vld [vmem:[%s334 + $0x6] sm:$0xff]
          %v336 = vlaneseq
          %v337 = vshrl.u32 %v336, 7
          %v338 = vsub.s32 6, %v337
          %v339 = vrot.slane %v277, %v338
          %v340 = vmul.f32 %v335, %v339
          %v341 = vadd.f32 %v331, %v340
          %v342 = vld [vmem:[%s334 + $0x7] sm:$0xff]
          %v343 = vlaneseq
          %v344 = vshrl.u32 %v343, 7
          %v345 = vsub.s32 7, %v344
          %v346 = vrot.slane %v277, %v345
          %v347 = vmul.f32 %v342, %v346
          %v348 = vadd.f32 %v341, %v347
          %v349 = vld [vmem:[%s334 + $0x8] sm:$0xff]
          %v350 = vlaneseq
          %v351 = vshrl.u32 %v350, 7
          %v352 = vsub.s32 0, %v351
          %v353 = vrot.slane %v278, %v352
          %v354 = vmul.f32 %v349, %v353
          %v355 = vadd.f32 %v348, %v354
          %s356 = smul.u32 %s280, 8
          %s357 = scalar_lea.vmem %s178, %s356 [#allocation6]
          %358 = vst [vmem:[%s357] sm:$0xff] %v355
        $region45: #{tpu_custom_call.1} parent=27 // loop_footer
          %s284 = sadd.s32 1, %s280
        $region46: #{tpu_custom_call.1} parent=27 // loop_footer_branch
          %279 = sbr.rel target = $region42
        $region47: #{tpu_custom_call.1} parent=27 // loop_exit
          _
        %s359 = sand.u32 %s90, 1
        %s360 = scalar_lea.sflag [#allocation5], %s359
        %s361 = sand.u32 %s90, 1
        %s362 = smul.addr %s361, 128
        %s363 = scalar_lea.vmem [#allocation6], %s362
        // Predicated region
        $region48: #{tpu_custom_call.1} parent=27 // pred_check
          %p364 = pneg %p100
        $region49: #{tpu_custom_call.1} parent=27 // pred_check_branch
          %366 = sbr.rel (%p364) target = $region51
        $region50: #{tpu_custom_call.1} parent=27 // pred_region
          %s368 = ssub.s32 2048, 2048
          %369 = vsyncadd %s360, %s368
          %s370 = smul.addr %s23, 48
          %s371 = sadd.s32 %s24, %s370
          %s372 = smul.addr %s371, 128
          %s373 = scalar_lea.hbm %s2, %s372
          %s374 = sshll.u32 %s363, 4
          %s375 = int_to_ptr.vmem [resolvable:$true] %s374
          %380 = dma.vmem_to_hbm [thread:$0]  %s375, 2048, %s373, %s360, 128, 384, 8
        $region51: #{tpu_custom_call.1} parent=27 // pred_fallthru
          _
      $region28: #{tpu_custom_call.1} parent=5 // pred_fallthru
        _
      %p381 = scmp.le.s32.totalorder 2, %s14
      // Predicated region
      $region52: #{tpu_custom_call.1} parent=5 // pred_check
        %p382 = pneg %p381
      $region53: #{tpu_custom_call.1} parent=5 // pred_check_branch
        %384 = sbr.rel (%p382) target = $region55
      $region54: #{tpu_custom_call.1} parent=5 // pred_region
        %s385 = ssub.s32 %s14, 2
        // Predicated region
        $region56: #{tpu_custom_call.1} parent=54 // pred_check
          %p386 = pneg %p106
        $region57: #{tpu_custom_call.1} parent=54 // pred_check_branch
          %388 = sbr.rel (%p386) target = $region59
        $region58: #{tpu_custom_call.1} parent=54 // pred_region
          %s389 = sand.u32 %s91, 1
          %s390 = scalar_lea.sflag [#allocation5], %s389
          %s391 = sand.u32 %s91, 1
          %s392 = smul.addr %s391, 128
          %s393 = scalar_lea.vmem [#allocation6], %s392
          %394 = dma.done %s390, 2048
        $region59: #{tpu_custom_call.1} parent=54 // pred_fallthru
          _
      $region55: #{tpu_custom_call.1} parent=5 // pred_fallthru
        _
    $region6: #{tpu_custom_call.1} parent=1 // loop_footer
      %s18 = sadd.s32 1, %s14
    $region7: #{tpu_custom_call.1} parent=1 // loop_footer_branch
      %13 = sbr.rel target = $region3
    $region8: #{tpu_custom_call.1} parent=1 // loop_exit
      _
    %395 = vsyncpa [#allocation4], 1
    %s396 = scalar_lea.sflag [#allocation4], 1
    %397 = vsyncpa %s396, 1
    %398 = vsyncpa [#allocation5], 1
    %s399 = scalar_lea.sflag [#allocation5], 1
    %400 = vsyncpa %s399, 1

</llo_original>
